<compile_context>
chip_gen: v7x
topology: tpu7x:2x2x1
jax: 0.10.0
libtpu: 0.0.40
codegen_flags: <defaults>
</compile_context>

<pallas_src>
from functools import partial

import jax
import jax.numpy as jnp
from jax.experimental import pallas as pl
from jax.experimental.pallas import tpu as pltpu


# ----------------------------------------------------------------------------
# Kernel 1: tiled linear layer (matmul + optional bias)
# ----------------------------------------------------------------------------
def _linear_bias_kernel(a_ref, w_ref, b_ref, o_ref, acc_ref):
    @pl.when(pl.program_id(2) == 0)
    def _():
        acc_ref[...] = jnp.zeros_like(acc_ref)

    acc_ref[...] += jnp.dot(a_ref[...], w_ref[...],
                            preferred_element_type=jnp.float32)

    @pl.when(pl.program_id(2) == pl.num_programs(2) - 1)
    def _():
        o_ref[...] = (acc_ref[...] + b_ref[...].astype(jnp.float32)).astype(
            o_ref.dtype)


def _linear_nobias_kernel(a_ref, w_ref, o_ref, acc_ref):
    @pl.when(pl.program_id(2) == 0)
    def _():
        acc_ref[...] = jnp.zeros_like(acc_ref)

    acc_ref[...] += jnp.dot(a_ref[...], w_ref[...],
                            preferred_element_type=jnp.float32)

    @pl.when(pl.program_id(2) == pl.num_programs(2) - 1)
    def _():
        o_ref[...] = acc_ref[...].astype(o_ref.dtype)


def _ceil_to(x, m):
    return ((x + m - 1) // m) * m


def _tile_and_pad(dim, target):
    """Pick a tile size and padded extent for one matmul dim.

    If the dim fits in one target-sized tile we use the full dim (always a
    legal block shape); otherwise we use the target tile and pad the dim up
    to a multiple of it (zero padding is exact for matmul).
    """
    if dim <= target:
        return dim, dim
    return target, _ceil_to(dim, target)


def pallas_linear(x2d, w, b=None, *, tm=256, tn=256, tk=512):
    """x2d: (M, K), w: (out, K) [nn.Linear layout], b: (out,) or None -> (M, out).

    Tile sizes (256, 256, 512) keep per-step VMEM at ~1.5 MiB/tile, which fits
    the default scoped-VMEM budget on v5e (16 MiB), v6e (32 MiB) and v7x
    (32 MiB scoped / 64 MiB physical) with double-buffering.
    """
    M, K = x2d.shape
    Nout = w.shape[0]
    wt = jnp.transpose(w)                      # (K, Nout)

    TM, Mp = _tile_and_pad(M, tm)
    TN, Np = _tile_and_pad(Nout, tn)
    TK, Kp = _tile_and_pad(K, tk)

    if (Mp, Kp) != (M, K):
        x2d = jnp.pad(x2d, ((0, Mp - M), (0, Kp - K)))
    if (Kp, Np) != (K, Nout):
        wt = jnp.pad(wt, ((0, Kp - K), (0, Np - Nout)))

    grid = (Mp // TM, Np // TN, Kp // TK)
    in_specs = [
        pl.BlockSpec((TM, TK), lambda i, j, k: (i, k)),
        pl.BlockSpec((TK, TN), lambda i, j, k: (k, j)),
    ]
    args = [x2d, wt]
    if b is not None:
        b2 = b.reshape(1, Nout)
        if Np != Nout:
            b2 = jnp.pad(b2, ((0, 0), (0, Np - Nout)))
        in_specs.append(pl.BlockSpec((1, TN), lambda i, j, k: (0, j)))
        args.append(b2)
        kernel = _linear_bias_kernel
    else:
        kernel = _linear_nobias_kernel

    out = pl.pallas_call(
        kernel,
        out_shape=jax.ShapeDtypeStruct((Mp, Np), x2d.dtype),
        grid=grid,
        in_specs=in_specs,
        out_specs=pl.BlockSpec((TM, TN), lambda i, j, k: (i, j)),
        scratch_shapes=[pltpu.VMEM((TM, TN), jnp.float32)],
        compiler_params=pltpu.CompilerParams(
            dimension_semantics=("parallel", "parallel", "arbitrary"),
        ),
    )(*args)

    if (Mp, Np) != (M, Nout):
        out = out[:M, :Nout]
    return out


# ----------------------------------------------------------------------------
# Kernel 2: per-batch attention over all heads
#   qkv tile: (1, N, 3C) laid out as [q0..qH-1 | k0..kH-1 | v0..vH-1] heads
#   outputs:  context (1, N, C) head-concatenated, attn (1, H, N, N)
# ----------------------------------------------------------------------------
def _attn_batch_kernel(qkv_ref, o_ref, attn_ref, *, num_heads, head_dim, scale):
    x = qkv_ref[0]                                 # (N, 3C) in input dtype
    C = num_heads * head_dim

    for h in range(num_heads):                     # unrolled, static slices
        q = x[:, h * head_dim:(h + 1) * head_dim]              # (N, D)
        k = x[:, C + h * head_dim:C + (h + 1) * head_dim]      # (N, D)
        v = x[:, 2 * C + h * head_dim:2 * C + (h + 1) * head_dim]

        # Fold scale into q (N*D mults instead of N*N); contract last dims of
        # q and k directly -> no in-kernel transpose of k.
        qs = q * scale
        s = jax.lax.dot_general(
            qs, k, (((1,), (1,)), ((), ())),
            preferred_element_type=jnp.float32)                # (N, N) f32

        m = jnp.max(s, axis=-1, keepdims=True)
        e = jnp.exp(s - m)
        l = jnp.sum(e, axis=-1, keepdims=True)
        p = e * pl.reciprocal(l, approx=True)                  # softmax

        attn_ref[0, h] = p.astype(attn_ref.dtype)
        o_ref[0, :, h * head_dim:(h + 1) * head_dim] = jnp.dot(
            p.astype(v.dtype), v, preferred_element_type=jnp.float32
        ).astype(o_ref.dtype)


def pallas_attention_core(qkv, num_heads, scale):
    """qkv: (B, N, 3C) -> (context (B, N, C), attn (B, H, N, N))."""
    B, N, threeC = qkv.shape
    C = threeC // 3
    D = C // num_heads
    return pl.pallas_call(
        partial(_attn_batch_kernel, num_heads=num_heads, head_dim=D,
                scale=scale),
        grid=(B,),
        out_shape=(
            jax.ShapeDtypeStruct((B, N, C), qkv.dtype),
            jax.ShapeDtypeStruct((B, num_heads, N, N), qkv.dtype),
        ),
        in_specs=[pl.BlockSpec((1, N, 3 * C), lambda b: (b, 0, 0))],
        out_specs=(
            pl.BlockSpec((1, N, C), lambda b: (b, 0, 0)),
            pl.BlockSpec((1, num_heads, N, N), lambda b: (b, 0, 0, 0)),
        ),
        compiler_params=pltpu.CompilerParams(
            dimension_semantics=("parallel",),
        ),
    )(qkv)


# ----------------------------------------------------------------------------
# Full Attention.forward
# ----------------------------------------------------------------------------
def attention_forward(x, params, num_heads):
    B, N, C = x.shape
    head_dim = C // num_heads
    scale = head_dim ** -0.5

    # qkv projection (qkv_bias=False -> no bias arg, no zeros DMA)
    qkv = pallas_linear(x.reshape(B * N, C), params["w_qkv"], None)
    qkv = qkv.reshape(B, N, 3 * C)                 # free reshape, no transpose

    # scaled dot-product attention, all heads per batch element
    o, attn = pallas_attention_core(qkv, num_heads, scale)

    # output projection (context already head-concatenated as (B, N, C))
    out = pallas_linear(o.reshape(B * N, C), params["w_proj"],
                        params["b_proj"]).reshape(B, N, C)
    # attn_drop / proj_drop are p=0.0 -> identity
    return out, attn


# ----------------------------------------------------------------------------
# Pure-JAX reference (for sanity check)
# ----------------------------------------------------------------------------
def attention_forward_ref(x, params, num_heads):
    B, N, C = x.shape
    D = C // num_heads
    scale = D ** -0.5
    qkv = x @ params["w_qkv"].T
    qkv = qkv.reshape(B, N, 3, num_heads, D).transpose(2, 0, 3, 1, 4)
    q, k, v = qkv[0], qkv[1], qkv[2]
    attn = jax.nn.softmax(jnp.einsum("bhnd,bhmd->bhnm", q, k) * scale, axis=-1)
    o = jnp.einsum("bhnm,bhmd->bhnd", attn, v).transpose(0, 2, 1, 3).reshape(B, N, C)
    out = o @ params["w_proj"].T + params["b_proj"]
    return out, attn


if __name__ == "__main__":
    B, N, C, num_heads = 2, 8, 32, 8

    key = jax.random.PRNGKey(0)
    k_x, k_qkv, k_proj, k_b = jax.random.split(key, 4)

    x = jax.random.normal(k_x, (B, N, C), dtype=jnp.float32)
    params = {
        "w_qkv": jax.random.normal(k_qkv, (3 * C, C), dtype=jnp.float32) * 0.05,
        "w_proj": jax.random.normal(k_proj, (C, C), dtype=jnp.float32) * 0.05,
        "b_proj": jax.random.normal(k_b, (C,), dtype=jnp.float32) * 0.01,
    }

    out, attn = attention_forward(x, params, num_heads)
    out = jax.block_until_ready(out)
    attn = jax.block_until_ready(attn)

    out_ref, attn_ref = attention_forward_ref(x, params, num_heads)
    assert out.shape == (B, N, C) and attn.shape == (B, num_heads, N, N)
    # tolerances account for the approx-reciprocal softmax normalization
    assert jnp.allclose(out, out_ref, atol=2e-3, rtol=2e-3)
    assert jnp.allclose(attn, attn_ref, atol=1e-3, rtol=1e-3)

    print("KERNEL_OK")
</pallas_src>

<mosaic_0001>
module attributes {stable_mosaic.version = 11 : i64} {
  func.func @_linear_nobias_kernel(%arg0: i32, %arg1: i32, %arg2: i32, %arg3: memref<16x32xf32, #tpu.memory_space<vmem>>, %arg4: memref<32x96xf32, #tpu.memory_space<vmem>>, %arg5: memref<16x96xf32, #tpu.memory_space<vmem>>, %arg6: memref<16x96xf32, #tpu.memory_space<vmem>>) attributes {dimension_semantics = [#tpu.dimension_semantics<parallel>, #tpu.dimension_semantics<parallel>, #tpu.dimension_semantics<arbitrary>], iteration_bounds = array<i64: 1, 1, 1>, scalar_prefetch = 0 : i64, scratch_operands = 1 : i64, tpu.core_type = #tpu.core_type<tc>, window_params = [{transform_indices = @transform_0, window_bounds = array<i64: 16, 32>}, {transform_indices = @transform_1, window_bounds = array<i64: 32, 96>}, {transform_indices = @transform_2, window_bounds = array<i64: 16, 96>}]} {
    %c0_i32 = arith.constant 0 : i32
    %0 = arith.cmpi eq, %arg2, %c0_i32 : i32
    %1 = arith.extui %0 : i1 to i32
    %c0_i32_0 = arith.constant 0 : i32
    %2 = arith.cmpi ne, %1, %c0_i32_0 : i32
    scf.if %2 {
      %cst_10 = arith.constant 0.000000e+00 : f32
      %12 = vector.broadcast %cst_10 : f32 to vector<16x96xf32>
      %c0_11 = arith.constant 0 : index
      %c0_12 = arith.constant 0 : index
      %13 = vector.load %arg6[%c0_11, %c0_12] : memref<16x96xf32, #tpu.memory_space<vmem>>, vector<16x96xf32>
      tpu.vector_store %arg6[%c0_11, %c0_12], %12 {strides = array<i32>} : memref<16x96xf32, #tpu.memory_space<vmem>>, vector<16x96xf32>,
    } else {
    }
    %c0 = arith.constant 0 : index
    %c0_1 = arith.constant 0 : index
    %3 = vector.load %arg6[%c0, %c0_1] : memref<16x96xf32, #tpu.memory_space<vmem>>, vector<16x96xf32>
    %c0_2 = arith.constant 0 : index
    %c0_3 = arith.constant 0 : index
    %4 = vector.load %arg3[%c0_2, %c0_3] : memref<16x32xf32, #tpu.memory_space<vmem>>, vector<16x32xf32>
    %c0_4 = arith.constant 0 : index
    %c0_5 = arith.constant 0 : index
    %5 = vector.load %arg4[%c0_4, %c0_5] : memref<32x96xf32, #tpu.memory_space<vmem>>, vector<32x96xf32>
    %cst = arith.constant dense<0.000000e+00> : vector<16x96xf32>
    %6 = tpu.matmul %4, %5, %cst {dimension_numbers = #tpu.dot_dimension_numbers<[1], [0], [0], [1], [0, 0, 1, 1], [], []>} : vector<16x32xf32>, vector<32x96xf32>, vector<16x96xf32> -> vector<16x96xf32>
    %7 = arith.addf %3, %6 : vector<16x96xf32>
    %c0_6 = arith.constant 0 : index
    %c0_7 = arith.constant 0 : index
    %8 = vector.load %arg6[%c0_6, %c0_7] : memref<16x96xf32, #tpu.memory_space<vmem>>, vector<16x96xf32>
    tpu.vector_store %arg6[%c0_6, %c0_7], %7 {strides = array<i32>} : memref<16x96xf32, #tpu.memory_space<vmem>>, vector<16x96xf32>,
    %c0_i32_8 = arith.constant 0 : i32
    %9 = arith.cmpi eq, %arg2, %c0_i32_8 : i32
    %10 = arith.extui %9 : i1 to i32
    %c0_i32_9 = arith.constant 0 : i32
    %11 = arith.cmpi ne, %10, %c0_i32_9 : i32
    scf.if %11 {
      %c0_10 = arith.constant 0 : index
      %c0_11 = arith.constant 0 : index
      %12 = vector.load %arg6[%c0_10, %c0_11] : memref<16x96xf32, #tpu.memory_space<vmem>>, vector<16x96xf32>
      %c0_12 = arith.constant 0 : index
      %c0_13 = arith.constant 0 : index
      %13 = vector.load %arg5[%c0_12, %c0_13] : memref<16x96xf32, #tpu.memory_space<vmem>>, vector<16x96xf32>
      tpu.vector_store %arg5[%c0_12, %c0_13], %12 {strides = array<i32>} : memref<16x96xf32, #tpu.memory_space<vmem>>, vector<16x96xf32>,
    } else {
    }
    return
  }
  func.func @transform_0(%arg0: i32, %arg1: i32, %arg2: i32) -> (i32, i32) {
    %c0_i32 = arith.constant 0 : i32
    return %arg0, %arg2 : i32, i32
  }
  func.func @transform_1(%arg0: i32, %arg1: i32, %arg2: i32) -> (i32, i32) {
    %c0_i32 = arith.constant 0 : i32
    return %arg2, %arg1 : i32, i32
  }
  func.func @transform_2(%arg0: i32, %arg1: i32, %arg2: i32) -> (i32, i32) {
    %c0_i32 = arith.constant 0 : i32
    return %arg0, %arg1 : i32, i32
  }
}

</mosaic_0001>

<llo_original>
// kernel: tpu_custom_call.1
$region0: #{tpu_custom_call.1}
  #allocation0 [shape = 'u32[]', space=smem, size = 0x4, offset = 0x4, fixed_abs, tag = 'smem constant byte address 0x4 - core index']
  #allocation1 [shape = 'u32[144,128]{1,0:T(1,128)}', space=vmem, size = 0x12000, scoped, tag = 'internal scratch']
  #allocation2 [shape = 'f32[16,96]{1,0:T(8,128)}', space=vmem, size = 0x2000, scoped, tag = 'scratch operand']
  %s0 = inlined_call_operand.hbm [shape: f32[16,32], index: 0, kind: input, shape index: {}]
  %s1 = inlined_call_operand.hbm [shape: f32[32,96], index: 1, kind: input, shape index: {}]
  %s2 = inlined_call_operand.hbm [shape: f32[16,96], index: 2, kind: output, shape index: {}]
  %s3 = sld [smem:[#allocation0]]
  $region34: #{tpu_custom_call.1} parent=0
    _
  %s5 = ssub.s32 1, %s3
  %s6 = scalar_select 0, %s5, %s3
  $region1: #{tpu_custom_call.1} parent=0
    #allocation3 [shape = 'u8[8192]{0}', space=vmem, size = 0x2000, scoped, tag = 'input window, operand 0, single buffered']
    #allocation4 [shape = 's32[1]{0}', space=sflag, size = 0x4, scoped, tag = 'scoped memory for tpu_custom_call.1']
    #allocation5 [shape = 's32[1]{0}', space=sflag, size = 0x4, scoped, tag = 'scoped memory for tpu_custom_call.1']
    #allocation6 [shape = 'u8[16384]{0}', space=vmem, size = 0x4000, scoped, tag = 'input window, operand 1, single buffered']
    #allocation7 [shape = 's32[1]{0}', space=sflag, size = 0x4, scoped, tag = 'scoped memory for tpu_custom_call.1']
    #allocation8 [shape = 'u8[8192]{0}', space=vmem, size = 0x2000, scoped, tag = 'output window, operand 0, single buffered']
    %7 = vsyncpa [#allocation4], 0
    %8 = vsyncpa [#allocation7], 0
    %9 = vsyncpa [#allocation5], 0
    // Predicated region
    $region2: #{tpu_custom_call.1} parent=1 // pred_check
      _
    $region3: #{tpu_custom_call.1} parent=1 // pred_check_branch
      %11 = sbr.rel (0) target = $region5
    $region4: #{tpu_custom_call.1} parent=1 // pred_region
      %s13 = ssub.s32 256, 256
      %14 = vsyncadd [#allocation4], %s13
      %s15 = sshll.u32 [#allocation3], 4
      %s16 = int_to_ptr.vmem [resolvable:$true] %s15
      %21 = dma.hbm_to_vmem [thread:$0]  %s0, 256, %s16, [#allocation4], 128, 128, 8
    $region5: #{tpu_custom_call.1} parent=1 // pred_fallthru
      _
    // Predicated region
    $region6: #{tpu_custom_call.1} parent=1 // pred_check
      _
    $region7: #{tpu_custom_call.1} parent=1 // pred_check_branch
      %23 = sbr.rel (0) target = $region9
    $region8: #{tpu_custom_call.1} parent=1 // pred_region
      %s25 = ssub.s32 512, 512
      %26 = vsyncadd [#allocation7], %s25
      %s27 = sshll.u32 [#allocation6], 4
      %s28 = int_to_ptr.vmem [resolvable:$true] %s27
      %33 = dma.hbm_to_vmem [thread:$0]  %s1, 512, %s28, [#allocation7], 128, 128, 8
    $region9: #{tpu_custom_call.1} parent=1 // pred_fallthru
      _
    // Predicated region
    $region10: #{tpu_custom_call.1} parent=1 // pred_check
      _
    $region11: #{tpu_custom_call.1} parent=1 // pred_check_branch
      %35 = sbr.rel (0) target = $region13
    $region12: #{tpu_custom_call.1} parent=1 // pred_region
      %36 = dma.done [#allocation4], 256
    $region13: #{tpu_custom_call.1} parent=1 // pred_fallthru
      _
    // Predicated region
    $region14: #{tpu_custom_call.1} parent=1 // pred_check
      _
    $region15: #{tpu_custom_call.1} parent=1 // pred_check_branch
      %38 = sbr.rel (0) target = $region17
    $region16: #{tpu_custom_call.1} parent=1 // pred_region
      %39 = dma.done [#allocation7], 512
    $region17: #{tpu_custom_call.1} parent=1 // pred_fallthru
      _
    %p40 = scmp.eq.s32.totalorder 0, 0
    // Predicated region
    $region18: #{tpu_custom_call.1} parent=1 // pred_check
      %p41 = pneg %p40
    $region19: #{tpu_custom_call.1} parent=1 // pred_check_branch
      %43 = sbr.rel (%p41) target = $region21
    $region20: #{tpu_custom_call.1} parent=1 // pred_region
      %vm44 = vcmask 785408
      %45 = vst.msk [vmem:[#allocation2] sm:$0xff] %vm44, 0.0
      %46 = vst.msk [vmem:[#allocation2 + $0x8] sm:$0xff] %vm44, 0.0
    $region21: #{tpu_custom_call.1} parent=1 // pred_fallthru
      _
    %v47 = vld [vmem:[#allocation2] sm:$0xff]
    %v48 = vld [vmem:[#allocation2 + $0x8] sm:$0xff]
    %v49 = vld [vmem:[#allocation3] sm:$0xff]
    %v50 = vld [vmem:[#allocation3 + $0x8] sm:$0xff]
    %v51 = vld [vmem:[#allocation6] sm:$0xff]
    %v52 = vld [vmem:[#allocation6 + $0x8] sm:$0xff]
    %v53 = vld [vmem:[#allocation6 + $0x10] sm:$0xff]
    %v54 = vld [vmem:[#allocation6 + $0x18] sm:$0xff]
    %vm55 = vcmask 261120
    %v57 = vsel %vm55, %v49, 0
    %v60 = vsel %vm55, %v50, 0
    %62 = vmatprep.subr.mxu0 0.0
    %63 = vmatpush1.msra.mxu0 %v51
    %64 = vmatprep.subr.mxu0 0.0
    %65 = vmatpush1.msra.mxu0 %v52
    %66 = vmatprep.subr.mxu0 0.0
    %67 = vmatpush1.msra.mxu0 %v53
    %68 = vmatprep.subr.mxu0 0.0
    %69 = vmatpush1.msra.mxu0 %v54
    %70 = vmatprep.subr.mxu0 0.0
    %71 = vmatpush1.msra.mxu0 0.0
    %72 = vmatprep.subr.mxu0 0.0
    %73 = vmatpush1.msra.mxu0 0.0
    %74 = vmatprep.subr.mxu0 0.0
    %75 = vmatpush1.msra.mxu0 0.0
    %76 = vmatprep.subr.mxu0 0.0
    %77 = vmatpush1.msra.mxu0 0.0
    %78 = vmatprep.subr.mxu0 0.0
    %79 = vmatpush1.msra.mxu0 0.0
    %80 = vmatprep.subr.mxu0 0.0
    %81 = vmatpush1.msra.mxu0 0.0
    %82 = vmatprep.subr.mxu0 0.0
    %83 = vmatpush1.msra.mxu0 0.0
    %84 = vmatprep.subr.mxu0 0.0
    %85 = vmatpush1.msra.mxu0 0.0
    %86 = vmatprep.subr.mxu0 0.0
    %87 = vmatpush1.msra.mxu0 0.0
    %88 = vmatprep.subr.mxu0 0.0
    %89 = vmatpush1.msra.mxu0 0.0
    %90 = vmatprep.subr.mxu0 0.0
    %91 = vmatpush1.msra.mxu0 0.0
    %92 = vmatprep.subr.mxu0 0.0
    %93 = vmatpush1.msra.mxu0 0.0
    %94 = vmatprep.subr.mxu0 0.0
    %95 = vmatpush1.msra.mxu0 0.0
    %96 = vmatprep.subr.mxu0 0.0
    %97 = vmatpush1.msra.mxu0 0.0
    %98 = vmatprep.subr.mxu0 0.0
    %99 = vmatpush1.msra.mxu0 0.0
    %100 = vmatprep.subr.mxu0 0.0
    %101 = vmatpush1.msra.mxu0 0.0
    %102 = vmatprep.subr.mxu0 0.0
    %103 = vmatpush1.msra.mxu0 0.0
    %104 = vmatprep.subr.mxu0 0.0
    %105 = vmatpush1.msra.mxu0 0.0
    %106 = vmatprep.subr.mxu0 0.0
    %107 = vmatpush1.msra.mxu0 0.0
    %108 = vmatprep.subr.mxu0 0.0
    %109 = vmatpush1.msra.mxu0 0.0
    %110 = vmatprep.subr.mxu0 0.0
    %111 = vmatpush1.msra.mxu0 0.0
    %112 = vmatprep.subr.mxu0 0.0
    %113 = vmatpush1.msra.mxu0 0.0
    %114 = vmatprep.subr.mxu0 0.0
    %115 = vmatpush1.msra.mxu0 0.0
    %116 = vmatprep.subr.mxu0 0.0
    %117 = vmatpush1.msra.mxu0 0.0
    %118 = vmatprep.subr.mxu0 0.0
    %119 = vmatpush1.msra.mxu0 0.0
    %120 = vmatprep.subr.mxu0 0.0
    %121 = vmatpush1.msra.mxu0 0.0
    %122 = vmatprep.subr.mxu0 0.0
    %123 = vmatpush1.msra.mxu0 0.0
    %124 = vmatprep.subr.mxu0 0.0
    %125 = vmatpush1.msra.mxu0 0.0
    %126 = vmatprep.mubr.f32.mxu0 0.0
    %127 = vmatmul.mubr.f32.gmra.mrb[0].mxu0 %v57
    %v128 = vpop.f32.mrb[0].mxu0
    %v129 = vadd.f32 0.0, %v128
    %v130 = vpop.f32.mrb[0].mxu0
    %131 = vmatprep.mubr.f32.mxu0 0.0
    %132 = vmatmul.mubr.f32.gmra.mrb[0].mxu0 %v60
    %v133 = vpop.f32.mrb[0].mxu0
    %v134 = vadd.f32 0.0, %v133
    %v135 = vpop.f32.mrb[0].mxu0
    %136 = vdwg.mxu0
    %v137 = vadd.f32 %v47, %v129
    %v138 = vadd.f32 %v48, %v134
    %vm139 = vcmask 785408
    %140 = vst.msk [vmem:[#allocation2] sm:$0xff] %vm139, %v137
    %141 = vst.msk [vmem:[#allocation2 + $0x8] sm:$0xff] %vm139, %v138
    // Predicated region
    $region22: #{tpu_custom_call.1} parent=1 // pred_check
      %p142 = pneg %p40
    $region23: #{tpu_custom_call.1} parent=1 // pred_check_branch
      %144 = sbr.rel (%p142) target = $region25
    $region24: #{tpu_custom_call.1} parent=1 // pred_region
      %v145 = vld [vmem:[#allocation2] sm:$0xff]
      %v146 = vld [vmem:[#allocation2 + $0x8] sm:$0xff]
      %147 = vst.msk [vmem:[#allocation8] sm:$0xff] %vm139, %v145
      %148 = vst.msk [vmem:[#allocation8 + $0x8] sm:$0xff] %vm139, %v146
    $region25: #{tpu_custom_call.1} parent=1 // pred_fallthru
      _
    // Predicated region
    $region26: #{tpu_custom_call.1} parent=1 // pred_check
      _
    $region27: #{tpu_custom_call.1} parent=1 // pred_check_branch
      %150 = sbr.rel (0) target = $region29
    $region28: #{tpu_custom_call.1} parent=1 // pred_region
      %s152 = ssub.s32 256, 256
      %153 = vsyncadd [#allocation5], %s152
      %s154 = sshll.u32 [#allocation8], 4
      %s155 = int_to_ptr.vmem [resolvable:$true] %s154
      %160 = dma.vmem_to_hbm [thread:$0]  %s155, 256, %s2, [#allocation5], 128, 128, 8
    $region29: #{tpu_custom_call.1} parent=1 // pred_fallthru
      _
    // Predicated region
    $region30: #{tpu_custom_call.1} parent=1 // pred_check
      _
    $region31: #{tpu_custom_call.1} parent=1 // pred_check_branch
      %162 = sbr.rel (0) target = $region33
    $region32: #{tpu_custom_call.1} parent=1 // pred_region
      %163 = dma.done [#allocation5], 256
    $region33: #{tpu_custom_call.1} parent=1 // pred_fallthru
      _
    %164 = vsyncpa [#allocation4], 1
    %165 = vsyncpa [#allocation7], 1
    %166 = vsyncpa [#allocation5], 1

</llo_original>
